<compile_context>
chip_gen: v5e
topology: v5e:2x2
jax: 0.10.0
libtpu: 0.0.40
codegen_flags: <defaults>
</compile_context>

<pallas_src>
import jax
import jax.numpy as jnp
from jax.experimental import pallas as pl
from jax.experimental.pallas import tpu as pltpu


def _mlp_kernel(x_ref, w1_ref, b1_ref, w2_ref, b2_ref, o_ref):
    # x_ref: (D, TT) tile — channels on sublanes, tokens on lanes.
    # w1_ref: (H, D), w2_ref: (H, H) conv-style [out, in]; b*_ref: (H, 1).
    x = x_ref[...]
    h = jnp.dot(w1_ref[...], x, preferred_element_type=jnp.float32) + b1_ref[...]
    h = jnp.maximum(h, 0.0)                     # ReLU
    # dropout (p=0.15) is identity in eval mode
    out = jnp.dot(w2_ref[...], h, preferred_element_type=jnp.float32) + b2_ref[...]
    o_ref[...] = (out + x).astype(o_ref.dtype)  # residual link


def mlp_pallas(x_nchw, w1, b1, w2, b2, *, max_token_tile=1024):
    """x_nchw: [B, D, N, W] float32.
    w1: [H, D] (conv [out,in]), b1: [H], w2: [H, H], b2: [H]."""
    B, D, N, W = x_nchw.shape
    H = w1.shape[0]
    assert w1.shape == (H, D) and w2.shape == (H, H)
    assert H == D, "residual add requires hidden_dim == input_dim"

    NW = N * W
    x_tok = x_nchw.reshape(B, D, NW)            # pure reshape, no transpose

    # Token tile: multiple of 128 (lane-dense stores), capped for VMEM.
    tt = min(max_token_tile, pl.cdiv(NW, 128) * 128)
    nw_pad = pl.cdiv(NW, tt) * tt
    if nw_pad != NW:
        x_tok = jnp.pad(x_tok, ((0, 0), (0, 0), (0, nw_pad - NW)))

    b1_2d = b1.reshape(H, 1)
    b2_2d = b2.reshape(H, 1)

    grid = (B, nw_pad // tt)

    out_tok = pl.pallas_call(
        _mlp_kernel,
        out_shape=jax.ShapeDtypeStruct((B, D, nw_pad), x_tok.dtype),
        grid_spec=pl.GridSpec(
            grid=grid,
            in_specs=[
                pl.BlockSpec((None, D, tt), lambda b, t: (b, 0, t)),  # x tile
                pl.BlockSpec((H, D), lambda b, t: (0, 0)),            # w1 (resident)
                pl.BlockSpec((H, 1), lambda b, t: (0, 0)),            # b1 (resident)
                pl.BlockSpec((H, H), lambda b, t: (0, 0)),            # w2 (resident)
                pl.BlockSpec((H, 1), lambda b, t: (0, 0)),            # b2 (resident)
            ],
            out_specs=pl.BlockSpec((None, D, tt), lambda b, t: (b, 0, t)),
        ),
        compiler_params=pltpu.CompilerParams(
            dimension_semantics=("parallel", "parallel"),
            vmem_limit_bytes=64 * 1024 * 1024,
        ),
    )(x_tok, w1, b1_2d, w2, b2_2d)

    out_tok = out_tok[:, :, :NW]                # drop token padding
    return out_tok.reshape(B, D, N, W)


def _reference(x_nchw, w1, b1, w2, b2):
    # plain-JAX reference of the same forward pass (1x1 convs as matmuls)
    B, D, N, W = x_nchw.shape
    x = x_nchw.reshape(B, D, N * W)
    h = jnp.maximum(jnp.einsum("hd,bdm->bhm", w1, x) + b1[None, :, None], 0.0)
    out = jnp.einsum("hk,bkm->bhm", w2, h) + b2[None, :, None] + x
    return out.reshape(B, D, N, W)


if __name__ == "__main__":
    key = jax.random.PRNGKey(0)
    B, D, N, W = 2, 32, 128, 1       # input_dim == hidden_dim == 32
    H = D

    k_x, k_w1, k_b1, k_w2, k_b2 = jax.random.split(key, 5)
    x = jax.random.normal(k_x, (B, D, N, W), dtype=jnp.float32)

    # Conv2d 1x1 weights in PyTorch layout [out, in] (kernel dims squeezed)
    w1 = jax.random.normal(k_w1, (H, D), dtype=jnp.float32) * (1.0 / jnp.sqrt(D))
    b1 = jax.random.normal(k_b1, (H,), dtype=jnp.float32) * 0.01
    w2 = jax.random.normal(k_w2, (H, H), dtype=jnp.float32) * (1.0 / jnp.sqrt(H))
    b2 = jax.random.normal(k_b2, (H,), dtype=jnp.float32) * 0.01

    out = mlp_pallas(x, w1, b1, w2, b2)
    out = jax.block_until_ready(out)

    ref = _reference(x, w1, b1, w2, b2)
    assert out.shape == (B, D, N, W)
    assert jnp.allclose(out, ref, atol=1e-4, rtol=1e-4), "mismatch vs reference"

    print("KERNEL_OK")
</pallas_src>

<mosaic_0001>
module attributes {stable_mosaic.version = 11 : i64} {
  func.func @_mlp_kernel(%arg0: i32, %arg1: i32, %arg2: memref<1x32x128xf32, #tpu.memory_space<vmem>>, %arg3: memref<32x32xf32, #tpu.memory_space<vmem>>, %arg4: memref<32x1xf32, #tpu.memory_space<vmem>>, %arg5: memref<32x32xf32, #tpu.memory_space<vmem>>, %arg6: memref<32x1xf32, #tpu.memory_space<vmem>>, %arg7: memref<1x32x128xf32, #tpu.memory_space<vmem>>) attributes {dimension_semantics = [#tpu.dimension_semantics<parallel>, #tpu.dimension_semantics<parallel>], iteration_bounds = array<i64: 2, 1>, scalar_prefetch = 0 : i64, scratch_operands = 0 : i64, tpu.core_type = #tpu.core_type<tc>, window_params = [{transform_indices = @transform_0, window_bounds = array<i64: 1, 32, 128>}, {pipeline_mode = #tpu.pipeline_mode<synchronous>, transform_indices = @transform_1, window_bounds = array<i64: 32, 32>}, {pipeline_mode = #tpu.pipeline_mode<synchronous>, transform_indices = @transform_2, window_bounds = array<i64: 32, 1>}, {pipeline_mode = #tpu.pipeline_mode<synchronous>, transform_indices = @transform_3, window_bounds = array<i64: 32, 32>}, {pipeline_mode = #tpu.pipeline_mode<synchronous>, transform_indices = @transform_4, window_bounds = array<i64: 32, 1>}, {transform_indices = @transform_5, window_bounds = array<i64: 1, 32, 128>}]} {
    %c0 = arith.constant 0 : index
    %c0_0 = arith.constant 0 : index
    %c0_1 = arith.constant 0 : index
    %0 = vector.load %arg2[%c0, %c0_0, %c0_1] : memref<1x32x128xf32, #tpu.memory_space<vmem>>, vector<1x32x128xf32>
    %1 = vector.shape_cast %0 : vector<1x32x128xf32> to vector<32x128xf32>
    %c0_2 = arith.constant 0 : index
    %c0_3 = arith.constant 0 : index
    %2 = vector.load %arg3[%c0_2, %c0_3] : memref<32x32xf32, #tpu.memory_space<vmem>>, vector<32x32xf32>
    %cst = arith.constant dense<0.000000e+00> : vector<32x128xf32>
    %3 = tpu.matmul %2, %1, %cst {dimension_numbers = #tpu.dot_dimension_numbers<[1], [0], [0], [1], [0, 0, 1, 1], [], []>} : vector<32x32xf32>, vector<32x128xf32>, vector<32x128xf32> -> vector<32x128xf32>
    %c0_4 = arith.constant 0 : index
    %c0_5 = arith.constant 0 : index
    %4 = vector.load %arg4[%c0_4, %c0_5] : memref<32x1xf32, #tpu.memory_space<vmem>>, vector<32x1xf32>
    %5 = vector.broadcast %4 : vector<32x1xf32> to vector<32x128xf32>
    %6 = arith.addf %3, %5 : vector<32x128xf32>
    %cst_6 = arith.constant 0.000000e+00 : f32
    %7 = vector.broadcast %cst_6 : f32 to vector<32x128xf32>
    %8 = arith.maximumf %6, %7 : vector<32x128xf32>
    %c0_7 = arith.constant 0 : index
    %c0_8 = arith.constant 0 : index
    %9 = vector.load %arg5[%c0_7, %c0_8] : memref<32x32xf32, #tpu.memory_space<vmem>>, vector<32x32xf32>
    %cst_9 = arith.constant dense<0.000000e+00> : vector<32x128xf32>
    %10 = tpu.matmul %9, %8, %cst_9 {dimension_numbers = #tpu.dot_dimension_numbers<[1], [0], [0], [1], [0, 0, 1, 1], [], []>} : vector<32x32xf32>, vector<32x128xf32>, vector<32x128xf32> -> vector<32x128xf32>
    %c0_10 = arith.constant 0 : index
    %c0_11 = arith.constant 0 : index
    %11 = vector.load %arg6[%c0_10, %c0_11] : memref<32x1xf32, #tpu.memory_space<vmem>>, vector<32x1xf32>
    %12 = vector.broadcast %11 : vector<32x1xf32> to vector<32x128xf32>
    %13 = arith.addf %10, %12 : vector<32x128xf32>
    %14 = arith.addf %13, %1 : vector<32x128xf32>
    %c0_12 = arith.constant 0 : index
    %c0_13 = arith.constant 0 : index
    %c0_14 = arith.constant 0 : index
    %15 = vector.load %arg7[%c0_12, %c0_13, %c0_14] : memref<1x32x128xf32, #tpu.memory_space<vmem>>, vector<1x32x128xf32>
    %16 = vector.shape_cast %15 : vector<1x32x128xf32> to vector<32x128xf32>
    %17 = vector.shape_cast %14 : vector<32x128xf32> to vector<1x32x128xf32>
    tpu.vector_store %arg7[%c0_12, %c0_13, %c0_14], %17 {strides = array<i32>} : memref<1x32x128xf32, #tpu.memory_space<vmem>>, vector<1x32x128xf32>,
    return
  }
  func.func @transform_0(%arg0: i32, %arg1: i32) -> (i32, i32, i32) {
    %c0_i32 = arith.constant 0 : i32
    %c0_i32_0 = arith.constant 0 : i32
    return %arg0, %c0_i32, %arg1 : i32, i32, i32
  }
  func.func @transform_1(%arg0: i32, %arg1: i32) -> (i32, i32) {
    %c0_i32 = arith.constant 0 : i32
    %c0_i32_0 = arith.constant 0 : i32
    %c0_i32_1 = arith.constant 0 : i32
    return %c0_i32, %c0_i32_0 : i32, i32
  }
  func.func @transform_2(%arg0: i32, %arg1: i32) -> (i32, i32) {
    %c0_i32 = arith.constant 0 : i32
    %c0_i32_0 = arith.constant 0 : i32
    %c0_i32_1 = arith.constant 0 : i32
    return %c0_i32, %c0_i32_0 : i32, i32
  }
  func.func @transform_3(%arg0: i32, %arg1: i32) -> (i32, i32) {
    %c0_i32 = arith.constant 0 : i32
    %c0_i32_0 = arith.constant 0 : i32
    %c0_i32_1 = arith.constant 0 : i32
    return %c0_i32, %c0_i32_0 : i32, i32
  }
  func.func @transform_4(%arg0: i32, %arg1: i32) -> (i32, i32) {
    %c0_i32 = arith.constant 0 : i32
    %c0_i32_0 = arith.constant 0 : i32
    %c0_i32_1 = arith.constant 0 : i32
    return %c0_i32, %c0_i32_0 : i32, i32
  }
  func.func @transform_5(%arg0: i32, %arg1: i32) -> (i32, i32, i32) {
    %c0_i32 = arith.constant 0 : i32
    %c0_i32_0 = arith.constant 0 : i32
    return %arg0, %c0_i32, %arg1 : i32, i32, i32
  }
}

</mosaic_0001>

<llo_original>
// kernel: tpu_custom_call.1
$region0: #{tpu_custom_call.1}
  #allocation0 [shape = 'u32[]', space=smem, size = 0x4, offset = 0x4, fixed_abs, tag = 'smem constant byte address 0x4 - core index']
  #allocation1 [shape = 'u32[72,128]{1,0:T(1,128)}', space=vmem, size = 0x9000, scoped, tag = 'internal scratch']
  %s0 = inlined_call_operand.vmem [shape: f32[2,32,128], index: 0, kind: input, shape index: {}]
  %s1 = inlined_call_operand.hbm [shape: f32[32,32], index: 1, kind: input, shape index: {}]
  %s2 = inlined_call_operand.vmem [shape: f32[32,1], index: 2, kind: input, shape index: {}]
  %s3 = inlined_call_operand.hbm [shape: f32[32,32], index: 3, kind: input, shape index: {}]
  %s4 = inlined_call_operand.vmem [shape: f32[32,1], index: 4, kind: input, shape index: {}]
  %s5 = inlined_call_operand.hbm [shape: f32[2,32,128], index: 5, kind: output, shape index: {}]
  %s6 = sld [smem:[#allocation0]]
  $region61: #{tpu_custom_call.1} parent=0
    _
  %s8 = ssub.s32 1, %s6
  %s9 = scalar_select 0, %s8, %s6
  $region1: #{tpu_custom_call.1} parent=0
    #allocation2 [shape = 'u8[16384]{0}', space=vmem, size = 0x4000, scoped, tag = 'input window, operand 1, single buffered']
    #allocation3 [shape = 's32[2]{0}', space=sflag, size = 0x8, scoped, tag = 'scoped memory for tpu_custom_call.1']
    #allocation4 [shape = 's32[2]{0}', space=sflag, size = 0x8, scoped, tag = 'scoped memory for tpu_custom_call.1']
    #allocation5 [shape = 'u8[16384]{0}', space=vmem, size = 0x4000, scoped, tag = 'input window, operand 3, single buffered']
    #allocation6 [shape = 's32[1]{0}', space=sflag, size = 0x4, scoped, tag = 'scoped memory for tpu_custom_call.1']
    #allocation7 [shape = 'u8[32768]{0}', space=vmem, size = 0x8000, scoped, tag = 'output window, operand 0']
    %10 = vsyncpa [#allocation3], 0
    %11 = vsyncpa [#allocation6], 0
    %12 = vsyncpa [#allocation4], 0
    %s13 = scalar_lea.sflag [#allocation4], 1
    %14 = vsyncpa %s13, 0
    loop: start=0, step=1, limit=4
    $region2: #{tpu_custom_call.1} parent=1 // loop_pre_header
      _
    $region3: #{tpu_custom_call.1} parent=1 // loop_header
      %s16 = sphi 0, %s20
      %p17 = scmp.ge.s32.totalorder %s16, 4
      %s23 = sphi 0, %s35
      %s24 = sphi 0, %s31
      %s25 = sphi 0, %s23
      %s26 = sphi 0, %s24
      %s27 = sphi 0, %s25
      %s28 = sphi 0, %s26
      %s40 = sphi 0, %s42
      %s43 = sphi 0, %s40
      %s44 = sphi 0, %s43
      %s60 = sphi 0, %s44
      %s64 = sphi 0, %s64
      %s66 = sphi 0, %s64
      %s67 = sphi 0, %s66
      %s81 = sphi 0, %s67
      %s85 = sphi 0, %s85
      %s87 = sphi 0, %s85
      %s88 = sphi 0, %s87
      %s102 = sphi 0, %s88
      %s106 = sphi 0, %s106
      %s108 = sphi 0, %s106
      %s109 = sphi 0, %s108
      %s123 = sphi 0, %s109
      %s127 = sphi 0, %s127
      %s129 = sphi 0, %s127
      %s130 = sphi 0, %s129
      %s144 = sphi 0, %s130
      %s152 = sphi 0, %s154
      %s155 = sphi 0, %s152
      %s156 = sphi 0, %s155
      %s172 = sphi 0, %s156
    $region4: #{tpu_custom_call.1} parent=1 // loop_header_branch
      %19 = sbr.rel (%p17) target = $region8
    $region5: #{tpu_custom_call.1} parent=1 // loop_body
      %s21 = ssub.s32 %s16, 1
      %s22 = ssub.s32 %s16, 2
      %s29 = sadd.s32 1, %s24
      %p30 = scmp.ge.s32.totalorder %s29, 1
      %s31 = scalar_select %p30, 0, %s29
      %s32 = sadd.s32 1, %s23
      %s33 = scalar_select %p30, %s32, %s23
      %p34 = scmp.ge.s32.totalorder %s33, 2
      %s35 = scalar_select %p34, 0, %s33
      %s36 = ssub.s32 %s23, %s35
      %s37 = ssub.s32 %s24, %s31
      %s38 = sor.u32 %s36, %s37
      %p39 = scmp.eq.s32.totalorder %s38, 0
      %s41 = sadd.s32 %s40, 1
      %s42 = scalar_select %p39, %s40, %s41
      %p45 = pneg %p39
      %p46 = scmp.eq.s32.totalorder %s16, 1
      %p47 = por %p45, %p46
      %p48 = scmp.ne.s32.totalorder %s40, %s43
      %p49 = scmp.eq.s32.totalorder %s16, 0
      %p50 = por %p48, %p49
      %p51 = scmp.ne.s32.totalorder %s40, %s43
      %p52 = scmp.eq.s32.totalorder %s21, 1
      %p53 = por %p51, %p52
      %p54 = scmp.ne.s32.totalorder %s43, %s44
      %p55 = scmp.eq.s32.totalorder %s21, 0
      %p56 = por %p54, %p55
      %p57 = scmp.ne.s32.totalorder %s43, %s44
      %p58 = scmp.eq.s32.totalorder %s22, 1
      %p59 = por %p57, %p58
      %p61 = scmp.ne.s32.totalorder %s44, %s60
      %p62 = scmp.eq.s32.totalorder %s22, 0
      %p63 = por %p61, %p62
      %s65 = sadd.s32 %s64, 1
      %p68 = scmp.eq.s32.totalorder %s16, 1
      %p69 = scmp.ne.s32.totalorder %s64, %s66
      %p70 = scmp.eq.s32.totalorder %s16, 0
      %p71 = por %p69, %p70
      %p72 = scmp.ne.s32.totalorder %s64, %s66
      %p73 = scmp.eq.s32.totalorder %s21, 1
      %p74 = por %p72, %p73
      %p75 = scmp.ne.s32.totalorder %s66, %s67
      %p76 = scmp.eq.s32.totalorder %s21, 0
      %p77 = por %p75, %p76
      %p78 = scmp.ne.s32.totalorder %s66, %s67
      %p79 = scmp.eq.s32.totalorder %s22, 1
      %p80 = por %p78, %p79
      %p82 = scmp.ne.s32.totalorder %s67, %s81
      %p83 = scmp.eq.s32.totalorder %s22, 0
      %p84 = por %p82, %p83
      %s86 = sadd.s32 %s85, 1
      %p89 = scmp.eq.s32.totalorder %s16, 1
      %p90 = scmp.ne.s32.totalorder %s85, %s87
      %p91 = scmp.eq.s32.totalorder %s16, 0
      %p92 = por %p90, %p91
      %p93 = scmp.ne.s32.totalorder %s85, %s87
      %p94 = scmp.eq.s32.totalorder %s21, 1
      %p95 = por %p93, %p94
      %p96 = scmp.ne.s32.totalorder %s87, %s88
      %p97 = scmp.eq.s32.totalorder %s21, 0
      %p98 = por %p96, %p97
      %p99 = scmp.ne.s32.totalorder %s87, %s88
      %p100 = scmp.eq.s32.totalorder %s22, 1
      %p101 = por %p99, %p100
      %p103 = scmp.ne.s32.totalorder %s88, %s102
      %p104 = scmp.eq.s32.totalorder %s22, 0
      %p105 = por %p103, %p104
      %s107 = sadd.s32 %s106, 1
      %p110 = scmp.eq.s32.totalorder %s16, 1
      %p111 = scmp.ne.s32.totalorder %s106, %s108
      %p112 = scmp.eq.s32.totalorder %s16, 0
      %p113 = por %p111, %p112
      %p114 = scmp.ne.s32.totalorder %s106, %s108
      %p115 = scmp.eq.s32.totalorder %s21, 1
      %p116 = por %p114, %p115
      %p117 = scmp.ne.s32.totalorder %s108, %s109
      %p118 = scmp.eq.s32.totalorder %s21, 0
      %p119 = por %p117, %p118
      %p120 = scmp.ne.s32.totalorder %s108, %s109
      %p121 = scmp.eq.s32.totalorder %s22, 1
      %p122 = por %p120, %p121
      %p124 = scmp.ne.s32.totalorder %s109, %s123
      %p125 = scmp.eq.s32.totalorder %s22, 0
      %p126 = por %p124, %p125
      %s128 = sadd.s32 %s127, 1
      %p131 = scmp.eq.s32.totalorder %s16, 1
      %p132 = scmp.ne.s32.totalorder %s127, %s129
      %p133 = scmp.eq.s32.totalorder %s16, 0
      %p134 = por %p132, %p133
      %p135 = scmp.ne.s32.totalorder %s127, %s129
      %p136 = scmp.eq.s32.totalorder %s21, 1
      %p137 = por %p135, %p136
      %p138 = scmp.ne.s32.totalorder %s129, %s130
      %p139 = scmp.eq.s32.totalorder %s21, 0
      %p140 = por %p138, %p139
      %p141 = scmp.ne.s32.totalorder %s129, %s130
      %p142 = scmp.eq.s32.totalorder %s22, 1
      %p143 = por %p141, %p142
      %p145 = scmp.ne.s32.totalorder %s130, %s144
      %p146 = scmp.eq.s32.totalorder %s22, 0
      %p147 = por %p145, %p146
      %s148 = ssub.s32 %s23, %s35
      %s149 = ssub.s32 %s24, %s31
      %s150 = sor.u32 %s148, %s149
      %p151 = scmp.eq.s32.totalorder %s150, 0
      %s153 = sadd.s32 %s152, 1
      %s154 = scalar_select %p151, %s152, %s153
      %p157 = pneg %p151
      %p158 = scmp.eq.s32.totalorder %s16, 1
      %p159 = por %p157, %p158
      %p160 = scmp.ne.s32.totalorder %s152, %s155
      %p161 = scmp.eq.s32.totalorder %s16, 0
      %p162 = por %p160, %p161
      %p163 = scmp.ne.s32.totalorder %s152, %s155
      %p164 = scmp.eq.s32.totalorder %s21, 1
      %p165 = por %p163, %p164
      %p166 = scmp.ne.s32.totalorder %s155, %s156
      %p167 = scmp.eq.s32.totalorder %s21, 0
      %p168 = por %p166, %p167
      %p169 = scmp.ne.s32.totalorder %s155, %s156
      %p170 = scmp.eq.s32.totalorder %s22, 1
      %p171 = por %p169, %p170
      %p173 = scmp.ne.s32.totalorder %s156, %s172
      %p174 = scmp.eq.s32.totalorder %s22, 0
      %p175 = por %p173, %p174
      %p176 = scmp.le.s32.totalorder 1, %s16
      %p177 = scmp.lt.s32.totalorder %s16, 3
      %p178 = pnand %p176, %p177
      %p179 = pneg %p178
      // Predicated region
      $region9: #{tpu_custom_call.1} parent=5 // pred_check
        _
      $region10: #{tpu_custom_call.1} parent=5 // pred_check_branch
        %181 = sbr.rel (%p178) target = $region12
      $region11: #{tpu_custom_call.1} parent=5 // pred_region
        %s182 = ssub.s32 %s16, 1
        // Predicated region
        $region13: #{tpu_custom_call.1} parent=11 // pred_check
          %p183 = pneg %p77
        $region14: #{tpu_custom_call.1} parent=11 // pred_check_branch
          %185 = sbr.rel (%p183) target = $region16
        $region15: #{tpu_custom_call.1} parent=11 // pred_region
          %187 = vsyncadd [#allocation3], 0
          %s188 = sshll.u32 %s1, 4
          %s189 = int_to_ptr.hbm [resolvable:$true] %s188
          %s190 = sshll.u32 [#allocation2], 4
          %s191 = int_to_ptr.vmem [resolvable:$true] %s190
          %196 = dma.hbm_to_vmem [thread:$0]  %s189, 512, %s191, [#allocation3], 128, 128, 8
        $region16: #{tpu_custom_call.1} parent=11 // pred_fallthru
          _
        // Predicated region
        $region17: #{tpu_custom_call.1} parent=11 // pred_check
          %p197 = pneg %p98
        $region18: #{tpu_custom_call.1} parent=11 // pred_check_branch
          %199 = sbr.rel (%p197) target = $region20
        $region19: #{tpu_custom_call.1} parent=11 // pred_region
          _
        $region20: #{tpu_custom_call.1} parent=11 // pred_fallthru
          _
        // Predicated region
        $region21: #{tpu_custom_call.1} parent=11 // pred_check
          %p200 = pneg %p119
        $region22: #{tpu_custom_call.1} parent=11 // pred_check_branch
          %202 = sbr.rel (%p200) target = $region24
        $region23: #{tpu_custom_call.1} parent=11 // pred_region
          %204 = vsyncadd [#allocation6], 0
          %s205 = sshll.u32 %s3, 4
          %s206 = int_to_ptr.hbm [resolvable:$true] %s205
          %s207 = sshll.u32 [#allocation5], 4
          %s208 = int_to_ptr.vmem [resolvable:$true] %s207
          %213 = dma.hbm_to_vmem [thread:$0]  %s206, 512, %s208, [#allocation6], 128, 128, 8
        $region24: #{tpu_custom_call.1} parent=11 // pred_fallthru
          _
        // Predicated region
        $region25: #{tpu_custom_call.1} parent=11 // pred_check
          %p214 = pneg %p140
        $region26: #{tpu_custom_call.1} parent=11 // pred_check_branch
          %216 = sbr.rel (%p214) target = $region28
        $region27: #{tpu_custom_call.1} parent=11 // pred_region
          _
        $region28: #{tpu_custom_call.1} parent=11 // pred_fallthru
          _
      $region12: #{tpu_custom_call.1} parent=5 // pred_fallthru
        _
      %p217 = scmp.lt.s32.totalorder %s16, 2
      // Predicated region
      $region29: #{tpu_custom_call.1} parent=5 // pred_check
        %p218 = pneg %p217
      $region30: #{tpu_custom_call.1} parent=5 // pred_check_branch
        %220 = sbr.rel (%p218) target = $region32
      $region31: #{tpu_custom_call.1} parent=5 // pred_region
        // Predicated region
        $region33: #{tpu_custom_call.1} parent=31 // pred_check
          %p221 = pneg %p50
        $region34: #{tpu_custom_call.1} parent=31 // pred_check_branch
          %223 = sbr.rel (%p221) target = $region36
        $region35: #{tpu_custom_call.1} parent=31 // pred_region
          %p224 = scmp.lt.s32.totalorder %s23, 1
          %s225 = scalar_select %p224, %s23, 1
          %p226 = scmp.lt.s32.totalorder %s24, 0
          %s227 = scalar_select %p226, %s24, 0
          %s228 = smul.addr %s225, 4
          %s229 = sadd.s32 %s227, %s228
          %s230 = smul.addr %s229, 8
          %s231 = scalar_lea.vmem %s0, %s230
        $region36: #{tpu_custom_call.1} parent=31 // pred_fallthru
          _
      $region32: #{tpu_custom_call.1} parent=5 // pred_fallthru
        _
      %p232 = scmp.le.s32.totalorder 1, %s16
      %p233 = scmp.lt.s32.totalorder %s16, 3
      %p234 = pnand %p232, %p233
      %p235 = pneg %p234
      // Predicated region
      $region37: #{tpu_custom_call.1} parent=5 // pred_check
        _
      $region38: #{tpu_custom_call.1} parent=5 // pred_check_branch
        %237 = sbr.rel (%p234) target = $region40
      $region39: #{tpu_custom_call.1} parent=5 // pred_region
        %s238 = ssub.s32 %s16, 1
        // Predicated region
        $region41: #{tpu_custom_call.1} parent=39 // pred_check
          %p239 = pneg %p77
        $region42: #{tpu_custom_call.1} parent=39 // pred_check_branch
          %241 = sbr.rel (%p239) target = $region44
        $region43: #{tpu_custom_call.1} parent=39 // pred_region
          %243 = dma.done [#allocation3], 512
        $region44: #{tpu_custom_call.1} parent=39 // pred_fallthru
          _
        // Predicated region
        $region45: #{tpu_custom_call.1} parent=39 // pred_check
          %p244 = pneg %p119
        $region46: #{tpu_custom_call.1} parent=39 // pred_check_branch
          %246 = sbr.rel (%p244) target = $region48
        $region47: #{tpu_custom_call.1} parent=39 // pred_region
          %248 = dma.done [#allocation6], 512
        $region48: #{tpu_custom_call.1} parent=39 // pred_fallthru
          _
        %p249 = scmp.lt.s32.totalorder %s25, 1
        %s250 = scalar_select %p249, %s25, 1
        %p251 = scmp.lt.s32.totalorder %s26, 0
        %s252 = scalar_select %p251, %s26, 0
        %s253 = smul.addr %s250, 4
        %s254 = sadd.s32 %s252, %s253
        %s255 = smul.addr %s254, 8
        %s256 = scalar_lea.vmem %s0, %s255
        %p257 = pneg %p56
        %p258 = pneg %p53
        %p259 = pneg %p77
        %p260 = pneg %p74
        %p261 = pneg %p98
        %p262 = pneg %p95
        %p263 = pneg %p119
        %p264 = pneg %p116
        %p265 = pneg %p140
        %p266 = pneg %p137
        %p267 = pneg %p168
        %p268 = pneg %p165
        %s269 = sand.u32 %s155, 1
        %s270 = scalar_lea.sflag [#allocation4], %s269
        %s271 = sand.u32 %s155, 1
        %s272 = smul.addr %s271, 32
        %s273 = scalar_lea.vmem [#allocation7], %s272
        %p274 = scmp.lt.s32.totalorder %s25, 1
        %s275 = scalar_select %p274, %s25, 1
        %p276 = scmp.lt.s32.totalorder %s26, 0
        %s277 = scalar_select %p276, %s26, 0
        %s278 = smul.addr %s275, 4
        %s279 = sadd.s32 %s277, %s278
        %s280 = smul.addr %s279, 8
        %s281 = scalar_lea.vmem %s0, %s280
        %v282 = vld [vmem:[%s281] sm:$0xff]
        %v283 = vld [vmem:[%s281 + $0x8] sm:$0xff]
        %v284 = vld [vmem:[%s281 + $0x10] sm:$0xff]
        %v285 = vld [vmem:[%s281 + $0x18] sm:$0xff]
        %v286 = vld [vmem:[#allocation2] sm:$0xff]
        %v287 = vld [vmem:[#allocation2 + $0x8] sm:$0xff]
        %v288 = vld [vmem:[#allocation2 + $0x10] sm:$0xff]
        %v289 = vld [vmem:[#allocation2 + $0x18] sm:$0xff]
        %v290 = vld [vmem:[%s2] sm:$0xff]
        %v291 = vld [vmem:[%s2 + $0x8] sm:$0xff]
        %v292 = vld [vmem:[%s2 + $0x10] sm:$0xff]
        %v293 = vld [vmem:[%s2 + $0x18] sm:$0xff]
        %295 = vset.pattern.permute.xlu0 0
        %296 = vperm.xlu0 %295, %v290
        %v297 = vpop.permute.xlu0 %296
        %300 = vset.pattern.permute.xlu0 0
        %301 = vperm.xlu0 %300, %v291
        %v302 = vpop.permute.xlu0 %301
        %305 = vset.pattern.permute.xlu0 0
        %306 = vperm.xlu0 %305, %v292
        %v307 = vpop.permute.xlu0 %306
        %310 = vset.pattern.permute.xlu0 0
        %311 = vperm.xlu0 %310, %v293
        %v312 = vpop.permute.xlu0 %311
        %vm314 = vcmask 261120
        %v316 = vsel %vm314, %v286, 0
        %v319 = vsel %vm314, %v287, 0
        %v322 = vsel %vm314, %v288, 0
        %v325 = vsel %vm314, %v289, 0
        %327 = vmatpush.msra.mxu0 0.0
        %328 = vmatpush.msra.mxu0 0.0
        %329 = vmatpush.msra.mxu0 0.0
        %330 = vmatpush.msra.mxu0 0.0
        %331 = vmatpush.msra.mxu0 0.0
        %332 = vmatpush.msra.mxu0 0.0
        %333 = vmatpush.msra.mxu0 0.0
        %334 = vmatpush.msra.mxu0 0.0
        %335 = vmatpush.msra.mxu0 0.0
        %336 = vmatpush.msra.mxu0 0.0
        %337 = vmatpush.msra.mxu0 0.0
        %338 = vmatpush.msra.mxu0 0.0
        %339 = vmatpush.msra.mxu0 %v285
        %340 = vmatpush.msra.mxu0 %v284
        %341 = vmatpush.msra.mxu0 %v283
        %342 = vmatpush.msra.mxu0 %v282
        %343 = vmatmul.f32.gmra.mxu0 %v316
        %v344 = vpop.f32.mrf.mxu0
        %v345 = vadd.f32 %v297, %v344
        %346 = vmatmul.f32.gmra.mxu0 %v319
        %v347 = vpop.f32.mrf.mxu0
        %v348 = vadd.f32 %v302, %v347
        %349 = vmatmul.f32.gmra.mxu0 %v322
        %v350 = vpop.f32.mrf.mxu0
        %v351 = vadd.f32 %v307, %v350
        %352 = vmatmul.f32.gmra.mxu0 %v325
        %v353 = vpop.f32.mrf.mxu0
        %v354 = vadd.f32 %v312, %v353
        %355 = vdwg.mxu0
        %v356 = vmax.f32 %v345, 0.0
        %v357 = vmax.f32 %v348, 0.0
        %v358 = vmax.f32 %v351, 0.0
        %v359 = vmax.f32 %v354, 0.0
        %v360 = vld [vmem:[#allocation5] sm:$0xff]
        %v361 = vld [vmem:[#allocation5 + $0x8] sm:$0xff]
        %v362 = vld [vmem:[#allocation5 + $0x10] sm:$0xff]
        %v363 = vld [vmem:[#allocation5 + $0x18] sm:$0xff]
        %v364 = vld [vmem:[%s4] sm:$0xff]
        %v365 = vld [vmem:[%s4 + $0x8] sm:$0xff]
        %v366 = vld [vmem:[%s4 + $0x10] sm:$0xff]
        %v367 = vld [vmem:[%s4 + $0x18] sm:$0xff]
        %369 = vset.pattern.permute.xlu0 0
        %370 = vperm.xlu0 %369, %v364
        %v371 = vpop.permute.xlu0 %370
        %374 = vset.pattern.permute.xlu0 0
        %375 = vperm.xlu0 %374, %v365
        %v376 = vpop.permute.xlu0 %375
        %379 = vset.pattern.permute.xlu0 0
        %380 = vperm.xlu0 %379, %v366
        %v381 = vpop.permute.xlu0 %380
        %384 = vset.pattern.permute.xlu0 0
        %385 = vperm.xlu0 %384, %v367
        %v386 = vpop.permute.xlu0 %385
        %v389 = vsel %vm314, %v360, 0
        %v392 = vsel %vm314, %v361, 0
        %v395 = vsel %vm314, %v362, 0
        %v398 = vsel %vm314, %v363, 0
        %400 = vmatpush.msra.mxu0 0.0
        %401 = vmatpush.msra.mxu0 0.0
        %402 = vmatpush.msra.mxu0 0.0
        %403 = vmatpush.msra.mxu0 0.0
        %404 = vmatpush.msra.mxu0 0.0
        %405 = vmatpush.msra.mxu0 0.0
        %406 = vmatpush.msra.mxu0 0.0
        %407 = vmatpush.msra.mxu0 0.0
        %408 = vmatpush.msra.mxu0 0.0
        %409 = vmatpush.msra.mxu0 0.0
        %410 = vmatpush.msra.mxu0 0.0
        %411 = vmatpush.msra.mxu0 0.0
        %412 = vmatpush.msra.mxu0 %v359
        %413 = vmatpush.msra.mxu0 %v358
        %414 = vmatpush.msra.mxu0 %v357
        %415 = vmatpush.msra.mxu0 %v356
        %416 = vmatmul.f32.gmra.mxu0 %v389
        %v417 = vpop.f32.mrf.mxu0
        %v418 = vadd.f32 %v371, %v417
        %419 = vmatmul.f32.gmra.mxu0 %v392
        %v420 = vpop.f32.mrf.mxu0
        %v421 = vadd.f32 %v376, %v420
        %422 = vmatmul.f32.gmra.mxu0 %v395
        %v423 = vpop.f32.mrf.mxu0
        %v424 = vadd.f32 %v381, %v423
        %425 = vmatmul.f32.gmra.mxu0 %v398
        %v426 = vpop.f32.mrf.mxu0
        %v427 = vadd.f32 %v386, %v426
        %428 = vdwg.mxu0
        %v429 = vadd.f32 %v418, %v282
        %v430 = vadd.f32 %v421, %v283
        %v431 = vadd.f32 %v424, %v284
        %v432 = vadd.f32 %v427, %v285
        %433 = vst [vmem:[%s273] sm:$0xff] %v429
        %434 = vst [vmem:[%s273 + $0x8] sm:$0xff] %v430
        %435 = vst [vmem:[%s273 + $0x10] sm:$0xff] %v431
        %436 = vst [vmem:[%s273 + $0x18] sm:$0xff] %v432
        %s437 = sand.u32 %s155, 1
        %s438 = scalar_lea.sflag [#allocation4], %s437
        %s439 = sand.u32 %s155, 1
        %s440 = smul.addr %s439, 32
        %s441 = scalar_lea.vmem [#allocation7], %s440
        // Predicated region
        $region49: #{tpu_custom_call.1} parent=39 // pred_check
          %p442 = pneg %p165
        $region50: #{tpu_custom_call.1} parent=39 // pred_check_branch
          %444 = sbr.rel (%p442) target = $region52
        $region51: #{tpu_custom_call.1} parent=39 // pred_region
          %446 = vsyncadd %s438, 0
          %s447 = smul.addr %s25, 4
          %s448 = sadd.s32 %s26, %s447
          %s449 = smul.addr %s448, 8
          %s450 = scalar_lea.hbm %s5, %s449
          %s451 = sshll.u32 %s441, 4
          %s452 = int_to_ptr.vmem [resolvable:$true] %s451
          %s453 = sshll.u32 %s450, 4
          %s454 = int_to_ptr.hbm [resolvable:$true] %s453
          %459 = dma.vmem_to_hbm [thread:$0]  %s452, 512, %s454, %s438, 128, 128, 8
        $region52: #{tpu_custom_call.1} parent=39 // pred_fallthru
          _
      $region40: #{tpu_custom_call.1} parent=5 // pred_fallthru
        _
      %p460 = scmp.le.s32.totalorder 2, %s16
      // Predicated region
      $region53: #{tpu_custom_call.1} parent=5 // pred_check
        %p461 = pneg %p460
      $region54: #{tpu_custom_call.1} parent=5 // pred_check_branch
        %463 = sbr.rel (%p461) target = $region56
      $region55: #{tpu_custom_call.1} parent=5 // pred_region
        %s464 = ssub.s32 %s16, 2
        // Predicated region
        $region57: #{tpu_custom_call.1} parent=55 // pred_check
          %p465 = pneg %p171
        $region58: #{tpu_custom_call.1} parent=55 // pred_check_branch
          %467 = sbr.rel (%p465) target = $region60
        $region59: #{tpu_custom_call.1} parent=55 // pred_region
          %s468 = sand.u32 %s156, 1
          %s469 = scalar_lea.sflag [#allocation4], %s468
          %s470 = sand.u32 %s156, 1
          %s471 = smul.addr %s470, 32
          %s472 = scalar_lea.vmem [#allocation7], %s471
          %474 = dma.done %s469, 512
        $region60: #{tpu_custom_call.1} parent=55 // pred_fallthru
          _
      $region56: #{tpu_custom_call.1} parent=5 // pred_fallthru
        _
    $region6: #{tpu_custom_call.1} parent=1 // loop_footer
      %s20 = sadd.s32 1, %s16
    $region7: #{tpu_custom_call.1} parent=1 // loop_footer_branch
      %15 = sbr.rel target = $region3
    $region8: #{tpu_custom_call.1} parent=1 // loop_exit
      _
    %475 = vsyncpa [#allocation3], 1
    %s476 = scalar_lea.sflag [#allocation3], 1
    %477 = vsyncpa %s476, 1
    %478 = vsyncpa [#allocation6], 1
    %479 = vsyncpa [#allocation4], 1
    %s480 = scalar_lea.sflag [#allocation4], 1
    %481 = vsyncpa %s480, 1

</llo_original>
